<compile_context>
chip_gen: v7x
topology: tpu7x:2x2x1
jax: 0.10.0
libtpu: 0.0.40
codegen_flags: <defaults>
</compile_context>

<pallas_src>
import functools

import jax
import jax.numpy as jnp
from jax.experimental import pallas as pl
from jax.experimental.pallas import tpu as pltpu


# -----------------------------------------------------------------------------
# Kernel: a tile of (batch*head) slices per grid step
# -----------------------------------------------------------------------------
def sdpa_kernel(q_ref, k_ref, v_ref, bias_ref, o_ref, attn_ref, *,
                inv_temperature):
    # blocks: q (bt, Nq, dk), k (bt, Nk, dk), v (bt, Nk, dv),
    #         bias (1 or bt, Nq, Nk), o (bt, Nq, dv), attn (bt, Nq, Nk)
    q = q_ref[...].astype(jnp.bfloat16)
    k = k_ref[...].astype(jnp.bfloat16)
    v = v_ref[...].astype(jnp.bfloat16)

    # Q @ K^T without materializing a transpose: contract d_k of both operands.
    s = jnp.einsum("bqd,bkd->bqk", q, k,
                   preferred_element_type=jnp.float32)       # f32 MXU acc
    # scale + additive mask bias (bias broadcasts over b when shared)
    s = s * inv_temperature + bias_ref[...]

    # numerically-stable softmax, all f32 (VPU / EUP)
    s = s - jnp.max(s, axis=-1, keepdims=True)
    p = jnp.exp(s)
    p = p * pl.reciprocal(jnp.sum(p, axis=-1, keepdims=True), approx=True)

    # TODO(synk): attn dropout is identity here (inference / eval mode).
    attn_ref[...] = p.astype(attn_ref.dtype)
    # P @ V on the MXU, bf16 inputs / f32 accumulation.
    o_ref[...] = jnp.einsum("bqk,bkd->bqd", p.astype(jnp.bfloat16), v,
                            preferred_element_type=jnp.float32
                            ).astype(o_ref.dtype)


# -----------------------------------------------------------------------------
# Helpers
# -----------------------------------------------------------------------------
def _pick_bh_tile(bh, nq, nk, dk, dv):
    """Largest divisor of bh whose per-step working set stays well under VMEM."""
    bytes_per_slice = 4 * (nq * dk + nk * dk + nk * dv + nq * dv + nq * nk)
    budget = 4 * 1024 * 1024        # ~4 MiB per step (double-buffered by Pallas)
    max_tile = max(1, budget // max(bytes_per_slice, 1))
    best = 1
    for t in range(1, bh + 1):
        if bh % t == 0 and t <= max_tile:
            best = t
    return best


# -----------------------------------------------------------------------------
# Wrapper
# -----------------------------------------------------------------------------
def scaled_dot_product_attention(q, k, v, temperature, attn_mask=None):
    """q, k: (B, H, N, d_k); v: (B, H, N, d_v). Returns (output, attn)."""
    assert temperature > 0, "temperature should be positive"
    b, h, nq, dk = q.shape
    nk = k.shape[2]
    dv = v.shape[3]
    bh = b * h

    qf = q.reshape(bh, nq, dk)
    kf = k.reshape(bh, nk, dk)
    vf = v.reshape(bh, nk, dv)

    bt = _pick_bh_tile(bh, nq, nk, dk, dv)
    grid = (bh // bt,)

    # Hoisted causal mask: torch.triu(ones, diagonal=1) == 1  ->  -1e9 bias.
    row = jnp.arange(nq, dtype=jnp.int32)[:, None]
    col = jnp.arange(nk, dtype=jnp.int32)[None, :]
    causal = col > row                                        # (nq, nk) bool

    if attn_mask is None:
        bias = jnp.where(causal, jnp.float32(-1e9), jnp.float32(0.0))[None]
        bias_spec = pl.BlockSpec((1, nq, nk), lambda i: (0, 0, 0))  # shared, resident
    else:
        am = jnp.broadcast_to(attn_mask, (b, h, nq, nk)).reshape(bh, nq, nk)
        masked = (am == 0) | causal[None]
        bias = jnp.where(masked, jnp.float32(-1e9), jnp.float32(0.0))
        bias_spec = pl.BlockSpec((bt, nq, nk), lambda i: (i, 0, 0))

    kern = functools.partial(sdpa_kernel,
                             inv_temperature=float(1.0 / temperature))
    out, attn = pl.pallas_call(
        kern,
        out_shape=(jax.ShapeDtypeStruct((bh, nq, dv), jnp.float32),
                   jax.ShapeDtypeStruct((bh, nq, nk), jnp.float32)),
        grid=grid,
        in_specs=[pl.BlockSpec((bt, nq, dk), lambda i: (i, 0, 0)),
                  pl.BlockSpec((bt, nk, dk), lambda i: (i, 0, 0)),
                  pl.BlockSpec((bt, nk, dv), lambda i: (i, 0, 0)),
                  bias_spec],
        out_specs=(pl.BlockSpec((bt, nq, dv), lambda i: (i, 0, 0)),
                   pl.BlockSpec((bt, nq, nk), lambda i: (i, 0, 0))),
        compiler_params=pltpu.CompilerParams(
            dimension_semantics=("parallel",),
            vmem_limit_bytes=64 << 20),
    )(qf, kf, vf, bias)

    return out.reshape(b, h, nq, dv), attn.reshape(b, h, nq, nk)


# -----------------------------------------------------------------------------
# Pure-JAX reference (f32) for a loose sanity check
# -----------------------------------------------------------------------------
def _sdpa_ref(q, k, v, temperature, attn_mask=None):
    s = jnp.einsum("bhqd,bhkd->bhqk", q / temperature, k)
    if attn_mask is not None:
        s = jnp.where(attn_mask == 0, -1e9, s)
    nq, nk = s.shape[-2], s.shape[-1]
    causal = jnp.arange(nk)[None, :] > jnp.arange(nq)[:, None]
    s = jnp.where(causal, -1e9, s)
    p = jax.nn.softmax(s, axis=-1)
    return jnp.einsum("bhqk,bhkd->bhqd", p, v), p


if __name__ == "__main__":
    # small config: B=2, H=2, N=8, d_k=d_v=16, temperature=sqrt(d_k)
    B, H, N, DK, DV = 2, 2, 8, 16, 16
    TEMPERATURE = DK ** 0.5

    root = jax.random.PRNGKey(0)
    kq, kk, kv = jax.random.split(root, 3)
    q = jax.random.normal(kq, (B, H, N, DK), jnp.float32)
    k = jax.random.normal(kk, (B, H, N, DK), jnp.float32)
    v = jax.random.normal(kv, (B, H, N, DV), jnp.float32)

    out, attn = scaled_dot_product_attention(q, k, v, TEMPERATURE)
    jax.block_until_ready((out, attn))

    assert out.shape == (B, H, N, DV)
    assert attn.shape == (B, H, N, N)

    # loose tolerance: bf16 MXU inputs / f32 accumulation vs pure-f32 reference
    out_ref, attn_ref = _sdpa_ref(q, k, v, TEMPERATURE)
    assert jnp.allclose(out, out_ref, atol=1e-1, rtol=1e-1)
    assert jnp.allclose(attn, attn_ref, atol=1e-1, rtol=1e-1)
    # rows of attn must sum to 1 and be causally masked
    assert jnp.allclose(jnp.sum(attn, axis=-1), 1.0, atol=1e-2)

    print("KERNEL_OK")
</pallas_src>

<mosaic_0001>
module attributes {stable_mosaic.version = 11 : i64} {
  func.func @sdpa_kernel(%arg0: i32, %arg1: memref<4x8x16xf32, #tpu.memory_space<vmem>>, %arg2: memref<4x8x16xf32, #tpu.memory_space<vmem>>, %arg3: memref<4x8x16xf32, #tpu.memory_space<vmem>>, %arg4: memref<1x8x8xf32, #tpu.memory_space<vmem>>, %arg5: memref<4x8x16xf32, #tpu.memory_space<vmem>>, %arg6: memref<4x8x8xf32, #tpu.memory_space<vmem>>) attributes {dimension_semantics = [#tpu.dimension_semantics<parallel>], iteration_bounds = array<i64: 1>, scalar_prefetch = 0 : i64, scratch_operands = 0 : i64, tpu.core_type = #tpu.core_type<tc>, window_params = [{transform_indices = @transform_0, window_bounds = array<i64: 4, 8, 16>}, {transform_indices = @transform_1, window_bounds = array<i64: 4, 8, 16>}, {transform_indices = @transform_2, window_bounds = array<i64: 4, 8, 16>}, {pipeline_mode = #tpu.pipeline_mode<synchronous>, transform_indices = @transform_3, window_bounds = array<i64: 1, 8, 8>}, {transform_indices = @transform_4, window_bounds = array<i64: 4, 8, 16>}, {transform_indices = @transform_5, window_bounds = array<i64: 4, 8, 8>}]} {
    %c0 = arith.constant 0 : index
    %c0_0 = arith.constant 0 : index
    %c0_1 = arith.constant 0 : index
    %0 = vector.load %arg1[%c0, %c0_0, %c0_1] : memref<4x8x16xf32, #tpu.memory_space<vmem>>, vector<4x8x16xf32>
    %1 = arith.truncf %0 : vector<4x8x16xf32> to vector<4x8x16xbf16>
    %c0_2 = arith.constant 0 : index
    %c0_3 = arith.constant 0 : index
    %c0_4 = arith.constant 0 : index
    %2 = vector.load %arg2[%c0_2, %c0_3, %c0_4] : memref<4x8x16xf32, #tpu.memory_space<vmem>>, vector<4x8x16xf32>
    %3 = arith.truncf %2 : vector<4x8x16xf32> to vector<4x8x16xbf16>
    %c0_5 = arith.constant 0 : index
    %c0_6 = arith.constant 0 : index
    %c0_7 = arith.constant 0 : index
    %4 = vector.load %arg3[%c0_5, %c0_6, %c0_7] : memref<4x8x16xf32, #tpu.memory_space<vmem>>, vector<4x8x16xf32>
    %5 = arith.truncf %4 : vector<4x8x16xf32> to vector<4x8x16xbf16>
    "tpu.trace_start"() <{level = 10 : i32, message = "bqd,bkd->bqk"}> : () -> ()
    %cst = arith.constant dense<0.000000e+00> : vector<4x8x8xf32>
    %6 = tpu.matmul %1, %3, %cst {dimension_numbers = #tpu.dot_dimension_numbers<[2], [2], [1], [1], [0, 0, 0, 1, 1, 1], [0], [0]>} : vector<4x8x16xbf16>, vector<4x8x16xbf16>, vector<4x8x8xf32> -> vector<4x8x8xf32>
    "tpu.trace_stop"() : () -> ()
    %cst_8 = arith.constant 2.500000e-01 : f32
    %7 = vector.broadcast %cst_8 : f32 to vector<4x8x8xf32>
    %8 = arith.mulf %6, %7 : vector<4x8x8xf32>
    %c0_9 = arith.constant 0 : index
    %c0_10 = arith.constant 0 : index
    %c0_11 = arith.constant 0 : index
    %9 = vector.load %arg4[%c0_9, %c0_10, %c0_11] : memref<1x8x8xf32, #tpu.memory_space<vmem>>, vector<1x8x8xf32>
    %10 = vector.broadcast %9 : vector<1x8x8xf32> to vector<4x8x8xf32>
    %11 = arith.addf %8, %10 : vector<4x8x8xf32>
    %cst_12 = arith.constant dense<0xFF800000> : vector<4x8xf32>
    %12 = vector.multi_reduction <maximumf>, %11, %cst_12 [2] : vector<4x8x8xf32> to vector<4x8xf32>
    %13 = vector.shape_cast %12 : vector<4x8xf32> to vector<4x8x1xf32>
    %14 = vector.broadcast %13 : vector<4x8x1xf32> to vector<4x8x8xf32>
    %15 = arith.subf %11, %14 : vector<4x8x8xf32>
    %16 = math.exp %15 : vector<4x8x8xf32>
    %cst_13 = arith.constant dense<0.000000e+00> : vector<4x8xf32>
    %17 = vector.multi_reduction <add>, %16, %cst_13 [2] : vector<4x8x8xf32> to vector<4x8xf32>
    %18 = vector.shape_cast %17 : vector<4x8xf32> to vector<4x8x1xf32>
    %19 = tpu.reciprocal %18 {approx = true} : vector<4x8x1xf32> -> vector<4x8x1xf32>
    %20 = vector.broadcast %19 : vector<4x8x1xf32> to vector<4x8x8xf32>
    %21 = arith.mulf %16, %20 : vector<4x8x8xf32>
    %c0_14 = arith.constant 0 : index
    %c0_15 = arith.constant 0 : index
    %c0_16 = arith.constant 0 : index
    %22 = vector.load %arg6[%c0_14, %c0_15, %c0_16] : memref<4x8x8xf32, #tpu.memory_space<vmem>>, vector<4x8x8xf32>
    tpu.vector_store %arg6[%c0_14, %c0_15, %c0_16], %21 {strides = array<i32>} : memref<4x8x8xf32, #tpu.memory_space<vmem>>, vector<4x8x8xf32>,
    %23 = arith.truncf %21 : vector<4x8x8xf32> to vector<4x8x8xbf16>
    "tpu.trace_start"() <{level = 10 : i32, message = "bqk,bkd->bqd"}> : () -> ()
    %cst_17 = arith.constant dense<0.000000e+00> : vector<4x8x16xf32>
    %24 = tpu.matmul %23, %5, %cst_17 {dimension_numbers = #tpu.dot_dimension_numbers<[2], [1], [1], [2], [0, 0, 0, 1, 1, 2], [0], [0]>} : vector<4x8x8xbf16>, vector<4x8x16xbf16>, vector<4x8x16xf32> -> vector<4x8x16xf32>
    "tpu.trace_stop"() : () -> ()
    %c0_18 = arith.constant 0 : index
    %c0_19 = arith.constant 0 : index
    %c0_20 = arith.constant 0 : index
    %25 = vector.load %arg5[%c0_18, %c0_19, %c0_20] : memref<4x8x16xf32, #tpu.memory_space<vmem>>, vector<4x8x16xf32>
    tpu.vector_store %arg5[%c0_18, %c0_19, %c0_20], %24 {strides = array<i32>} : memref<4x8x16xf32, #tpu.memory_space<vmem>>, vector<4x8x16xf32>,
    return
  }
  func.func @transform_0(%arg0: i32) -> (i32, i32, i32) {
    %c0_i32 = arith.constant 0 : i32
    %c0_i32_0 = arith.constant 0 : i32
    %c0_i32_1 = arith.constant 0 : i32
    return %arg0, %c0_i32, %c0_i32_0 : i32, i32, i32
  }
  func.func @transform_1(%arg0: i32) -> (i32, i32, i32) {
    %c0_i32 = arith.constant 0 : i32
    %c0_i32_0 = arith.constant 0 : i32
    %c0_i32_1 = arith.constant 0 : i32
    return %arg0, %c0_i32, %c0_i32_0 : i32, i32, i32
  }
  func.func @transform_2(%arg0: i32) -> (i32, i32, i32) {
    %c0_i32 = arith.constant 0 : i32
    %c0_i32_0 = arith.constant 0 : i32
    %c0_i32_1 = arith.constant 0 : i32
    return %arg0, %c0_i32, %c0_i32_0 : i32, i32, i32
  }
  func.func @transform_3(%arg0: i32) -> (i32, i32, i32) {
    %c0_i32 = arith.constant 0 : i32
    %c0_i32_0 = arith.constant 0 : i32
    %c0_i32_1 = arith.constant 0 : i32
    %c0_i32_2 = arith.constant 0 : i32
    return %c0_i32, %c0_i32_0, %c0_i32_1 : i32, i32, i32
  }
  func.func @transform_4(%arg0: i32) -> (i32, i32, i32) {
    %c0_i32 = arith.constant 0 : i32
    %c0_i32_0 = arith.constant 0 : i32
    %c0_i32_1 = arith.constant 0 : i32
    return %arg0, %c0_i32, %c0_i32_0 : i32, i32, i32
  }
  func.func @transform_5(%arg0: i32) -> (i32, i32, i32) {
    %c0_i32 = arith.constant 0 : i32
    %c0_i32_0 = arith.constant 0 : i32
    %c0_i32_1 = arith.constant 0 : i32
    return %arg0, %c0_i32, %c0_i32_0 : i32, i32, i32
  }
}

</mosaic_0001>

<llo_original>
// kernel: tpu_custom_call.1
$region0: #{tpu_custom_call.1}
  #allocation0 [shape = 'u32[]', space=smem, size = 0x4, offset = 0x4, fixed_abs, tag = 'smem constant byte address 0x4 - core index']
  #allocation1 [shape = 'u32[144,128]{1,0:T(1,128)}', space=vmem, size = 0x12000, scoped, tag = 'internal scratch']
  %s0 = inlined_call_operand.hbm [shape: f32[4,8,16], index: 0, kind: input, shape index: {}]
  %s1 = inlined_call_operand.hbm [shape: f32[4,8,16], index: 1, kind: input, shape index: {}]
  %s2 = inlined_call_operand.hbm [shape: f32[4,8,16], index: 2, kind: input, shape index: {}]
  %s3 = inlined_call_operand.hbm [shape: f32[1,8,8], index: 3, kind: input, shape index: {}]
  %s4 = inlined_call_operand.hbm [shape: f32[4,8,16], index: 4, kind: output, shape index: {0}]
  %s5 = inlined_call_operand.hbm [shape: f32[4,8,8], index: 5, kind: output, shape index: {1}]
  %6 = xla_tuple %s4, %s5
  %s7 = sld [smem:[#allocation0]]
  $region50: #{tpu_custom_call.1} parent=0
    _
  %s9 = ssub.s32 1, %s7
  %s10 = scalar_select 0, %s9, %s7
  $region1: #{tpu_custom_call.1} parent=0
    #allocation2 [shape = 'u8[16384]{0}', space=vmem, size = 0x4000, scoped, tag = 'input window, operand 0, single buffered']
    #allocation3 [shape = 's32[1]{0}', space=sflag, size = 0x4, scoped, tag = 'scoped memory for tpu_custom_call.1']
    #allocation4 [shape = 's32[1]{0}', space=sflag, size = 0x4, scoped, tag = 'scoped memory for tpu_custom_call.1']
    #allocation5 [shape = 'u8[16384]{0}', space=vmem, size = 0x4000, scoped, tag = 'input window, operand 1, single buffered']
    #allocation6 [shape = 's32[1]{0}', space=sflag, size = 0x4, scoped, tag = 'scoped memory for tpu_custom_call.1']
    #allocation7 [shape = 'u8[16384]{0}', space=vmem, size = 0x4000, scoped, tag = 'input window, operand 2, single buffered']
    #allocation8 [shape = 'u8[4096]{0}', space=vmem, size = 0x1000, scoped, tag = 'input window, operand 3, single buffered']
    #allocation9 [shape = 's32[1]{0}', space=sflag, size = 0x4, scoped, tag = 'scoped memory for tpu_custom_call.1']
    #allocation10 [shape = 'u8[16384]{0}', space=vmem, size = 0x4000, scoped, tag = 'output window, operand 0, single buffered']
    #allocation11 [shape = 'u8[16384]{0}', space=vmem, size = 0x4000, scoped, tag = 'output window, operand 1, single buffered']
    #allocation12 [shape = 's32[1]{0}', space=sflag, size = 0x4, scoped, tag = 'scoped memory for tpu_custom_call.1']
    %11 = vsyncpa [#allocation3], 0
    %12 = vsyncpa [#allocation6], 0
    %13 = vsyncpa [#allocation9], 0
    %14 = vsyncpa [#allocation4], 0
    %15 = vsyncpa [#allocation12], 0
    // Predicated region
    $region2: #{tpu_custom_call.1} parent=1 // pred_check
      _
    $region3: #{tpu_custom_call.1} parent=1 // pred_check_branch
      %17 = sbr.rel (0) target = $region5
    $region4: #{tpu_custom_call.1} parent=1 // pred_region
      %s19 = ssub.s32 512, 512
      %20 = vsyncadd [#allocation3], %s19
      %s21 = sshll.u32 [#allocation2], 4
      %s22 = int_to_ptr.vmem [resolvable:$true] %s21
      %27 = dma.hbm_to_vmem [thread:$0]  %s0, 512, %s22, [#allocation3], 128, 128, 8
    $region5: #{tpu_custom_call.1} parent=1 // pred_fallthru
      _
    // Predicated region
    $region6: #{tpu_custom_call.1} parent=1 // pred_check
      _
    $region7: #{tpu_custom_call.1} parent=1 // pred_check_branch
      %29 = sbr.rel (0) target = $region9
    $region8: #{tpu_custom_call.1} parent=1 // pred_region
      %s31 = ssub.s32 512, 512
      %32 = vsyncadd [#allocation6], %s31
      %s33 = sshll.u32 [#allocation5], 4
      %s34 = int_to_ptr.vmem [resolvable:$true] %s33
      %39 = dma.hbm_to_vmem [thread:$0]  %s1, 512, %s34, [#allocation6], 128, 128, 8
    $region9: #{tpu_custom_call.1} parent=1 // pred_fallthru
      _
    // Predicated region
    $region10: #{tpu_custom_call.1} parent=1 // pred_check
      _
    $region11: #{tpu_custom_call.1} parent=1 // pred_check_branch
      %41 = sbr.rel (0) target = $region13
    $region12: #{tpu_custom_call.1} parent=1 // pred_region
      %s43 = ssub.s32 512, 512
      %44 = vsyncadd [#allocation6], %s43
      %s45 = sshll.u32 [#allocation7], 4
      %s46 = int_to_ptr.vmem [resolvable:$true] %s45
      %51 = dma.hbm_to_vmem [thread:$0]  %s2, 512, %s46, [#allocation6], 128, 128, 8
    $region13: #{tpu_custom_call.1} parent=1 // pred_fallthru
      _
    // Predicated region
    $region14: #{tpu_custom_call.1} parent=1 // pred_check
      _
    $region15: #{tpu_custom_call.1} parent=1 // pred_check_branch
      %53 = sbr.rel (0) target = $region17
    $region16: #{tpu_custom_call.1} parent=1 // pred_region
      %s55 = ssub.s32 128, 128
      %56 = vsyncadd [#allocation9], %s55
      %s58 = sshll.u32 [#allocation8], 4
      %s59 = int_to_ptr.vmem [resolvable:$true] %s58
      %61 = dma.hbm_to_vmem [thread:$0]  %s3, 128, %s59, [#allocation9]
    $region17: #{tpu_custom_call.1} parent=1 // pred_fallthru
      _
    // Predicated region
    $region18: #{tpu_custom_call.1} parent=1 // pred_check
      _
    $region19: #{tpu_custom_call.1} parent=1 // pred_check_branch
      %63 = sbr.rel (0) target = $region21
    $region20: #{tpu_custom_call.1} parent=1 // pred_region
      %64 = dma.done [#allocation3], 512
    $region21: #{tpu_custom_call.1} parent=1 // pred_fallthru
      _
    // Predicated region
    $region22: #{tpu_custom_call.1} parent=1 // pred_check
      _
    $region23: #{tpu_custom_call.1} parent=1 // pred_check_branch
      %66 = sbr.rel (0) target = $region25
    $region24: #{tpu_custom_call.1} parent=1 // pred_region
      %67 = dma.done [#allocation6], 512
    $region25: #{tpu_custom_call.1} parent=1 // pred_fallthru
      _
    // Predicated region
    $region26: #{tpu_custom_call.1} parent=1 // pred_check
      _
    $region27: #{tpu_custom_call.1} parent=1 // pred_check_branch
      %69 = sbr.rel (0) target = $region29
    $region28: #{tpu_custom_call.1} parent=1 // pred_region
      %70 = dma.done [#allocation6], 512
    $region29: #{tpu_custom_call.1} parent=1 // pred_fallthru
      _
    // Predicated region
    $region30: #{tpu_custom_call.1} parent=1 // pred_check
      _
    $region31: #{tpu_custom_call.1} parent=1 // pred_check_branch
      %72 = sbr.rel (0) target = $region33
    $region32: #{tpu_custom_call.1} parent=1 // pred_region
      %73 = dma.done [#allocation9], 128
    $region33: #{tpu_custom_call.1} parent=1 // pred_fallthru
      _
    %v75 = vld [vmem:[#allocation2] sm:$0xff]
    %v76 = vld [vmem:[#allocation2 + $0x8] sm:$0xff]
    %v77 = vld [vmem:[#allocation2 + $0x10] sm:$0xff]
    %v78 = vld [vmem:[#allocation2 + $0x18] sm:$0xff]
    %v79 = vpack.c.bf16 %v75, %v75
    %v80 = vpack.c.bf16 %v76, %v76
    %v81 = vpack.c.bf16 %v77, %v77
    %v82 = vpack.c.bf16 %v78, %v78
    %v83 = vld [vmem:[#allocation5] sm:$0xff]
    %v84 = vld [vmem:[#allocation5 + $0x8] sm:$0xff]
    %v85 = vld [vmem:[#allocation5 + $0x10] sm:$0xff]
    %v86 = vld [vmem:[#allocation5 + $0x18] sm:$0xff]
    %v87 = vpack.c.bf16 %v83, %v83
    %v88 = vpack.c.bf16 %v84, %v84
    %v89 = vpack.c.bf16 %v85, %v85
    %v90 = vpack.c.bf16 %v86, %v86
    %v91 = vld [vmem:[#allocation7] sm:$0xff]
    %v92 = vld [vmem:[#allocation7 + $0x8] sm:$0xff]
    %v93 = vld [vmem:[#allocation7 + $0x10] sm:$0xff]
    %v94 = vld [vmem:[#allocation7 + $0x18] sm:$0xff]
    %v95 = vpack.c.bf16 %v91, %v91
    %v96 = vpack.c.bf16 %v92, %v92
    %v97 = vpack.c.bf16 %v93, %v93
    %v98 = vpack.c.bf16 %v94, %v94
    %vm99 = vcmask 130048
    %v101 = vsel %vm99, %v79, 0
    %v104 = vsel %vm99, %v87, 0
    %106 = vmatprep.subr.bf16.mxu0 0
    %107 = vmatpush1.bf16.xpose.msra.mxu0 %v104
    %108 = vmatprep.subr.bf16.mxu0 0
    %109 = vmatpush1.bf16.xpose.msra.mxu0 0
    %110 = vmatprep.subr.bf16.mxu0 0
    %111 = vmatpush1.bf16.xpose.msra.mxu0 0
    %112 = vmatprep.subr.bf16.mxu0 0
    %113 = vmatpush1.bf16.xpose.msra.mxu0 0
    %114 = vmatprep.subr.bf16.mxu0 0
    %115 = vmatpush1.bf16.xpose.msra.mxu0 0
    %116 = vmatprep.subr.bf16.mxu0 0
    %117 = vmatpush1.bf16.xpose.msra.mxu0 0
    %118 = vmatprep.subr.bf16.mxu0 0
    %119 = vmatpush1.bf16.xpose.msra.mxu0 0
    %120 = vmatprep.subr.bf16.mxu0 0
    %121 = vmatpush1.bf16.xpose.msra.mxu0 0
    %122 = vmatprep.subr.bf16.mxu0 0
    %123 = vmatpush1.bf16.xpose.msra.mxu0 0
    %124 = vmatprep.subr.bf16.mxu0 0
    %125 = vmatpush1.bf16.xpose.msra.mxu0 0
    %126 = vmatprep.subr.bf16.mxu0 0
    %127 = vmatpush1.bf16.xpose.msra.mxu0 0
    %128 = vmatprep.subr.bf16.mxu0 0
    %129 = vmatpush1.bf16.xpose.msra.mxu0 0
    %130 = vmatprep.subr.bf16.mxu0 0
    %131 = vmatpush1.bf16.xpose.msra.mxu0 0
    %132 = vmatprep.subr.bf16.mxu0 0
    %133 = vmatpush1.bf16.xpose.msra.mxu0 0
    %134 = vmatprep.subr.bf16.mxu0 0
    %135 = vmatpush1.bf16.xpose.msra.mxu0 0
    %136 = vmatprep.subr.bf16.mxu0 0
    %137 = vmatpush1.bf16.xpose.msra.mxu0 0
    %138 = vmatprep.mubr.bf16.mxu0 0
    %139 = vmatmul.mubr.bf16.gmra.mrb[0].mxu0 %v101
    %v140 = vpop.f32.mrb[0].mxu0
    %v141 = vadd.f32 0.0, %v140
    %v142 = vpop.f32.mrb[0].mxu0
    %v143 = vpop.f32.mrb[0].mxu0
    %v144 = vpop.f32.mrb[0].mxu0
    %145 = vdwg.mxu0
    %v147 = vsel %vm99, %v80, 0
    %v150 = vsel %vm99, %v88, 0
    %152 = vmatprep.subr.bf16.mxu0 0
    %153 = vmatpush1.bf16.xpose.msra.mxu0 %v150
    %154 = vmatprep.subr.bf16.mxu0 0
    %155 = vmatpush1.bf16.xpose.msra.mxu0 0
    %156 = vmatprep.subr.bf16.mxu0 0
    %157 = vmatpush1.bf16.xpose.msra.mxu0 0
    %158 = vmatprep.subr.bf16.mxu0 0
    %159 = vmatpush1.bf16.xpose.msra.mxu0 0
    %160 = vmatprep.subr.bf16.mxu0 0
    %161 = vmatpush1.bf16.xpose.msra.mxu0 0
    %162 = vmatprep.subr.bf16.mxu0 0
    %163 = vmatpush1.bf16.xpose.msra.mxu0 0
    %164 = vmatprep.subr.bf16.mxu0 0
    %165 = vmatpush1.bf16.xpose.msra.mxu0 0
    %166 = vmatprep.subr.bf16.mxu0 0
    %167 = vmatpush1.bf16.xpose.msra.mxu0 0
    %168 = vmatprep.subr.bf16.mxu0 0
    %169 = vmatpush1.bf16.xpose.msra.mxu0 0
    %170 = vmatprep.subr.bf16.mxu0 0
    %171 = vmatpush1.bf16.xpose.msra.mxu0 0
    %172 = vmatprep.subr.bf16.mxu0 0
    %173 = vmatpush1.bf16.xpose.msra.mxu0 0
    %174 = vmatprep.subr.bf16.mxu0 0
    %175 = vmatpush1.bf16.xpose.msra.mxu0 0
    %176 = vmatprep.subr.bf16.mxu0 0
    %177 = vmatpush1.bf16.xpose.msra.mxu0 0
    %178 = vmatprep.subr.bf16.mxu0 0
    %179 = vmatpush1.bf16.xpose.msra.mxu0 0
    %180 = vmatprep.subr.bf16.mxu0 0
    %181 = vmatpush1.bf16.xpose.msra.mxu0 0
    %182 = vmatprep.subr.bf16.mxu0 0
    %183 = vmatpush1.bf16.xpose.msra.mxu0 0
    %184 = vmatprep.mubr.bf16.mxu0 0
    %185 = vmatmul.mubr.bf16.gmra.mrb[0].mxu0 %v147
    %v186 = vpop.f32.mrb[0].mxu0
    %v187 = vadd.f32 0.0, %v186
    %v188 = vpop.f32.mrb[0].mxu0
    %v189 = vpop.f32.mrb[0].mxu0
    %v190 = vpop.f32.mrb[0].mxu0
    %191 = vdwg.mxu0
    %v193 = vsel %vm99, %v81, 0
    %v196 = vsel %vm99, %v89, 0
    %198 = vmatprep.subr.bf16.mxu0 0
    %199 = vmatpush1.bf16.xpose.msra.mxu0 %v196
    %200 = vmatprep.subr.bf16.mxu0 0
    %201 = vmatpush1.bf16.xpose.msra.mxu0 0
    %202 = vmatprep.subr.bf16.mxu0 0
    %203 = vmatpush1.bf16.xpose.msra.mxu0 0
    %204 = vmatprep.subr.bf16.mxu0 0
    %205 = vmatpush1.bf16.xpose.msra.mxu0 0
    %206 = vmatprep.subr.bf16.mxu0 0
    %207 = vmatpush1.bf16.xpose.msra.mxu0 0
    %208 = vmatprep.subr.bf16.mxu0 0
    %209 = vmatpush1.bf16.xpose.msra.mxu0 0
    %210 = vmatprep.subr.bf16.mxu0 0
    %211 = vmatpush1.bf16.xpose.msra.mxu0 0
    %212 = vmatprep.subr.bf16.mxu0 0
    %213 = vmatpush1.bf16.xpose.msra.mxu0 0
    %214 = vmatprep.subr.bf16.mxu0 0
    %215 = vmatpush1.bf16.xpose.msra.mxu0 0
    %216 = vmatprep.subr.bf16.mxu0 0
    %217 = vmatpush1.bf16.xpose.msra.mxu0 0
    %218 = vmatprep.subr.bf16.mxu0 0
    %219 = vmatpush1.bf16.xpose.msra.mxu0 0
    %220 = vmatprep.subr.bf16.mxu0 0
    %221 = vmatpush1.bf16.xpose.msra.mxu0 0
    %222 = vmatprep.subr.bf16.mxu0 0
    %223 = vmatpush1.bf16.xpose.msra.mxu0 0
    %224 = vmatprep.subr.bf16.mxu0 0
    %225 = vmatpush1.bf16.xpose.msra.mxu0 0
    %226 = vmatprep.subr.bf16.mxu0 0
    %227 = vmatpush1.bf16.xpose.msra.mxu0 0
    %228 = vmatprep.subr.bf16.mxu0 0
    %229 = vmatpush1.bf16.xpose.msra.mxu0 0
    %230 = vmatprep.mubr.bf16.mxu0 0
    %231 = vmatmul.mubr.bf16.gmra.mrb[0].mxu0 %v193
    %v232 = vpop.f32.mrb[0].mxu0
    %v233 = vadd.f32 0.0, %v232
    %v234 = vpop.f32.mrb[0].mxu0
    %v235 = vpop.f32.mrb[0].mxu0
    %v236 = vpop.f32.mrb[0].mxu0
    %237 = vdwg.mxu0
    %v239 = vsel %vm99, %v82, 0
    %v242 = vsel %vm99, %v90, 0
    %244 = vmatprep.subr.bf16.mxu0 0
    %245 = vmatpush1.bf16.xpose.msra.mxu0 %v242
    %246 = vmatprep.subr.bf16.mxu0 0
    %247 = vmatpush1.bf16.xpose.msra.mxu0 0
    %248 = vmatprep.subr.bf16.mxu0 0
    %249 = vmatpush1.bf16.xpose.msra.mxu0 0
    %250 = vmatprep.subr.bf16.mxu0 0
    %251 = vmatpush1.bf16.xpose.msra.mxu0 0
    %252 = vmatprep.subr.bf16.mxu0 0
    %253 = vmatpush1.bf16.xpose.msra.mxu0 0
    %254 = vmatprep.subr.bf16.mxu0 0
    %255 = vmatpush1.bf16.xpose.msra.mxu0 0
    %256 = vmatprep.subr.bf16.mxu0 0
    %257 = vmatpush1.bf16.xpose.msra.mxu0 0
    %258 = vmatprep.subr.bf16.mxu0 0
    %259 = vmatpush1.bf16.xpose.msra.mxu0 0
    %260 = vmatprep.subr.bf16.mxu0 0
    %261 = vmatpush1.bf16.xpose.msra.mxu0 0
    %262 = vmatprep.subr.bf16.mxu0 0
    %263 = vmatpush1.bf16.xpose.msra.mxu0 0
    %264 = vmatprep.subr.bf16.mxu0 0
    %265 = vmatpush1.bf16.xpose.msra.mxu0 0
    %266 = vmatprep.subr.bf16.mxu0 0
    %267 = vmatpush1.bf16.xpose.msra.mxu0 0
    %268 = vmatprep.subr.bf16.mxu0 0
    %269 = vmatpush1.bf16.xpose.msra.mxu0 0
    %270 = vmatprep.subr.bf16.mxu0 0
    %271 = vmatpush1.bf16.xpose.msra.mxu0 0
    %272 = vmatprep.subr.bf16.mxu0 0
    %273 = vmatpush1.bf16.xpose.msra.mxu0 0
    %274 = vmatprep.subr.bf16.mxu0 0
    %275 = vmatpush1.bf16.xpose.msra.mxu0 0
    %276 = vmatprep.mubr.bf16.mxu0 0
    %277 = vmatmul.mubr.bf16.gmra.mrb[0].mxu0 %v239
    %v278 = vpop.f32.mrb[0].mxu0
    %v279 = vadd.f32 0.0, %v278
    %v280 = vpop.f32.mrb[0].mxu0
    %v281 = vpop.f32.mrb[0].mxu0
    %v282 = vpop.f32.mrb[0].mxu0
    %283 = vdwg.mxu0
    %v284 = vmul.f32 %v141, 0.25
    %v285 = vmul.f32 %v187, 0.25
    %v286 = vmul.f32 %v233, 0.25
    %v287 = vmul.f32 %v279, 0.25
    %v288 = vld [vmem:[#allocation8] sm:$0xff]
    %v289 = vadd.f32 %v284, %v288
    %v290 = vadd.f32 %v285, %v288
    %v291 = vadd.f32 %v286, %v288
    %v292 = vadd.f32 %v287, %v288
    %vm293 = vcmask 64512
    %v294 = vsel %vm293, %v289, -inf
    %295 = vmax.xlane.f32.xlu0 %v294
    %v296 = vpop.xlane.xlu0 %295
    %v297 = vsel %vm293, %v290, -inf
    %298 = vmax.xlane.f32.xlu0 %v297
    %v299 = vpop.xlane.xlu0 %298
    %v300 = vsel %vm293, %v291, -inf
    %301 = vmax.xlane.f32.xlu0 %v300
    %v302 = vpop.xlane.xlu0 %301
    %v303 = vsel %vm293, %v292, -inf
    %304 = vmax.xlane.f32.xlu0 %v303
    %v305 = vpop.xlane.xlu0 %304
    %v306 = vsub.f32 %v289, %v296
    %v307 = vsub.f32 %v290, %v299
    %v308 = vsub.f32 %v291, %v302
    %v309 = vsub.f32 %v292, %v305
    %v310 = vmul.f32 %v306, 1.442695
    %v311 = vpow.pop %v310
    %v312 = vmul.f32 %v307, 1.442695
    %v313 = vpow.pop %v312
    %v314 = vmul.f32 %v308, 1.442695
    %v315 = vpow.pop %v314
    %v316 = vmul.f32 %v309, 1.442695
    %v317 = vpow.pop %v316
    %v318 = vsel %vm293, %v311, 0.0
    %319 = vadd.xlane.f32.xlu0 %v318
    %v320 = vpop.xlane.xlu0 %319
    %v321 = vsel %vm293, %v313, 0.0
    %322 = vadd.xlane.f32.xlu0 %v321
    %v323 = vpop.xlane.xlu0 %322
    %v324 = vsel %vm293, %v315, 0.0
    %325 = vadd.xlane.f32.xlu0 %v324
    %v326 = vpop.xlane.xlu0 %325
    %v327 = vsel %vm293, %v317, 0.0
    %328 = vadd.xlane.f32.xlu0 %v327
    %v329 = vpop.xlane.xlu0 %328
    %v330 = vrcp.pop %v320
    %v331 = vrcp.pop %v323
    %v332 = vrcp.pop %v326
    %v333 = vrcp.pop %v329
    %v334 = vmul.f32 %v311, %v330
    %v335 = vmul.f32 %v313, %v331
    %v336 = vmul.f32 %v315, %v332
    %v337 = vmul.f32 %v317, %v333
    %338 = vst.msk [vmem:[#allocation11] sm:$0xff] %vm293, %v334
    %339 = vst.msk [vmem:[#allocation11 + $0x8] sm:$0xff] %vm293, %v335
    %340 = vst.msk [vmem:[#allocation11 + $0x10] sm:$0xff] %vm293, %v336
    %341 = vst.msk [vmem:[#allocation11 + $0x18] sm:$0xff] %vm293, %v337
    %v342 = vpack.c.bf16 %v334, %v334
    %v343 = vpack.c.bf16 %v335, %v335
    %v344 = vpack.c.bf16 %v336, %v336
    %v345 = vpack.c.bf16 %v337, %v337
    %v347 = vsel %vm293, %v342, 0
    %vm349 = vcmask 1043456
    %v351 = vsel %vm349, %v95, 0
    %353 = vmatprep.subr.bf16.mxu0 0
    %354 = vmatpush1.bf16.msra.mxu0 %v351
    %355 = vmatprep.subr.bf16.mxu0 0
    %356 = vmatpush1.bf16.msra.mxu0 0
    %357 = vmatprep.subr.bf16.mxu0 0
    %358 = vmatpush1.bf16.msra.mxu0 0
    %359 = vmatprep.subr.bf16.mxu0 0
    %360 = vmatpush1.bf16.msra.mxu0 0
    %361 = vmatprep.subr.bf16.mxu0 0
    %362 = vmatpush1.bf16.msra.mxu0 0
    %363 = vmatprep.subr.bf16.mxu0 0
    %364 = vmatpush1.bf16.msra.mxu0 0
    %365 = vmatprep.subr.bf16.mxu0 0
    %366 = vmatpush1.bf16.msra.mxu0 0
    %367 = vmatprep.subr.bf16.mxu0 0
    %368 = vmatpush1.bf16.msra.mxu0 0
    %369 = vmatprep.subr.bf16.mxu0 0
    %370 = vmatpush1.bf16.msra.mxu0 0
    %371 = vmatprep.subr.bf16.mxu0 0
    %372 = vmatpush1.bf16.msra.mxu0 0
    %373 = vmatprep.subr.bf16.mxu0 0
    %374 = vmatpush1.bf16.msra.mxu0 0
    %375 = vmatprep.subr.bf16.mxu0 0
    %376 = vmatpush1.bf16.msra.mxu0 0
    %377 = vmatprep.subr.bf16.mxu0 0
    %378 = vmatpush1.bf16.msra.mxu0 0
    %379 = vmatprep.subr.bf16.mxu0 0
    %380 = vmatpush1.bf16.msra.mxu0 0
    %381 = vmatprep.subr.bf16.mxu0 0
    %382 = vmatpush1.bf16.msra.mxu0 0
    %383 = vmatprep.subr.bf16.mxu0 0
    %384 = vmatpush1.bf16.msra.mxu0 0
    %385 = vmatprep.mubr.bf16.mxu0 0
    %386 = vmatmul.mubr.bf16.gmra.mrb[0].mxu0 %v347
    %v387 = vpop.f32.mrb[0].mxu0
    %v388 = vadd.f32 0.0, %v387
    %v389 = vpop.f32.mrb[0].mxu0
    %v390 = vpop.f32.mrb[0].mxu0
    %v391 = vpop.f32.mrb[0].mxu0
    %392 = vdwg.mxu0
    %v394 = vsel %vm293, %v343, 0
    %v397 = vsel %vm349, %v96, 0
    %399 = vmatprep.subr.bf16.mxu0 0
    %400 = vmatpush1.bf16.msra.mxu0 %v397
    %401 = vmatprep.subr.bf16.mxu0 0
    %402 = vmatpush1.bf16.msra.mxu0 0
    %403 = vmatprep.subr.bf16.mxu0 0
    %404 = vmatpush1.bf16.msra.mxu0 0
    %405 = vmatprep.subr.bf16.mxu0 0
    %406 = vmatpush1.bf16.msra.mxu0 0
    %407 = vmatprep.subr.bf16.mxu0 0
    %408 = vmatpush1.bf16.msra.mxu0 0
    %409 = vmatprep.subr.bf16.mxu0 0
    %410 = vmatpush1.bf16.msra.mxu0 0
    %411 = vmatprep.subr.bf16.mxu0 0
    %412 = vmatpush1.bf16.msra.mxu0 0
    %413 = vmatprep.subr.bf16.mxu0 0
    %414 = vmatpush1.bf16.msra.mxu0 0
    %415 = vmatprep.subr.bf16.mxu0 0
    %416 = vmatpush1.bf16.msra.mxu0 0
    %417 = vmatprep.subr.bf16.mxu0 0
    %418 = vmatpush1.bf16.msra.mxu0 0
    %419 = vmatprep.subr.bf16.mxu0 0
    %420 = vmatpush1.bf16.msra.mxu0 0
    %421 = vmatprep.subr.bf16.mxu0 0
    %422 = vmatpush1.bf16.msra.mxu0 0
    %423 = vmatprep.subr.bf16.mxu0 0
    %424 = vmatpush1.bf16.msra.mxu0 0
    %425 = vmatprep.subr.bf16.mxu0 0
    %426 = vmatpush1.bf16.msra.mxu0 0
    %427 = vmatprep.subr.bf16.mxu0 0
    %428 = vmatpush1.bf16.msra.mxu0 0
    %429 = vmatprep.subr.bf16.mxu0 0
    %430 = vmatpush1.bf16.msra.mxu0 0
    %431 = vmatprep.mubr.bf16.mxu0 0
    %432 = vmatmul.mubr.bf16.gmra.mrb[0].mxu0 %v394
    %v433 = vpop.f32.mrb[0].mxu0
    %v434 = vadd.f32 0.0, %v433
    %v435 = vpop.f32.mrb[0].mxu0
    %v436 = vpop.f32.mrb[0].mxu0
    %v437 = vpop.f32.mrb[0].mxu0
    %438 = vdwg.mxu0
    %v440 = vsel %vm293, %v344, 0
    %v443 = vsel %vm349, %v97, 0
    %445 = vmatprep.subr.bf16.mxu0 0
    %446 = vmatpush1.bf16.msra.mxu0 %v443
    %447 = vmatprep.subr.bf16.mxu0 0
    %448 = vmatpush1.bf16.msra.mxu0 0
    %449 = vmatprep.subr.bf16.mxu0 0
    %450 = vmatpush1.bf16.msra.mxu0 0
    %451 = vmatprep.subr.bf16.mxu0 0
    %452 = vmatpush1.bf16.msra.mxu0 0
    %453 = vmatprep.subr.bf16.mxu0 0
    %454 = vmatpush1.bf16.msra.mxu0 0
    %455 = vmatprep.subr.bf16.mxu0 0
    %456 = vmatpush1.bf16.msra.mxu0 0
    %457 = vmatprep.subr.bf16.mxu0 0
    %458 = vmatpush1.bf16.msra.mxu0 0
    %459 = vmatprep.subr.bf16.mxu0 0
    %460 = vmatpush1.bf16.msra.mxu0 0
    %461 = vmatprep.subr.bf16.mxu0 0
    %462 = vmatpush1.bf16.msra.mxu0 0
    %463 = vmatprep.subr.bf16.mxu0 0
    %464 = vmatpush1.bf16.msra.mxu0 0
    %465 = vmatprep.subr.bf16.mxu0 0
    %466 = vmatpush1.bf16.msra.mxu0 0
    %467 = vmatprep.subr.bf16.mxu0 0
    %468 = vmatpush1.bf16.msra.mxu0 0
    %469 = vmatprep.subr.bf16.mxu0 0
    %470 = vmatpush1.bf16.msra.mxu0 0
    %471 = vmatprep.subr.bf16.mxu0 0
    %472 = vmatpush1.bf16.msra.mxu0 0
    %473 = vmatprep.subr.bf16.mxu0 0
    %474 = vmatpush1.bf16.msra.mxu0 0
    %475 = vmatprep.subr.bf16.mxu0 0
    %476 = vmatpush1.bf16.msra.mxu0 0
    %477 = vmatprep.mubr.bf16.mxu0 0
    %478 = vmatmul.mubr.bf16.gmra.mrb[0].mxu0 %v440
    %v479 = vpop.f32.mrb[0].mxu0
    %v480 = vadd.f32 0.0, %v479
    %v481 = vpop.f32.mrb[0].mxu0
    %v482 = vpop.f32.mrb[0].mxu0
    %v483 = vpop.f32.mrb[0].mxu0
    %484 = vdwg.mxu0
    %v486 = vsel %vm293, %v345, 0
    %v489 = vsel %vm349, %v98, 0
    %491 = vmatprep.subr.bf16.mxu0 0
    %492 = vmatpush1.bf16.msra.mxu0 %v489
    %493 = vmatprep.subr.bf16.mxu0 0
    %494 = vmatpush1.bf16.msra.mxu0 0
    %495 = vmatprep.subr.bf16.mxu0 0
    %496 = vmatpush1.bf16.msra.mxu0 0
    %497 = vmatprep.subr.bf16.mxu0 0
    %498 = vmatpush1.bf16.msra.mxu0 0
    %499 = vmatprep.subr.bf16.mxu0 0
    %500 = vmatpush1.bf16.msra.mxu0 0
    %501 = vmatprep.subr.bf16.mxu0 0
    %502 = vmatpush1.bf16.msra.mxu0 0
    %503 = vmatprep.subr.bf16.mxu0 0
    %504 = vmatpush1.bf16.msra.mxu0 0
    %505 = vmatprep.subr.bf16.mxu0 0
    %506 = vmatpush1.bf16.msra.mxu0 0
    %507 = vmatprep.subr.bf16.mxu0 0
    %508 = vmatpush1.bf16.msra.mxu0 0
    %509 = vmatprep.subr.bf16.mxu0 0
    %510 = vmatpush1.bf16.msra.mxu0 0
    %511 = vmatprep.subr.bf16.mxu0 0
    %512 = vmatpush1.bf16.msra.mxu0 0
    %513 = vmatprep.subr.bf16.mxu0 0
    %514 = vmatpush1.bf16.msra.mxu0 0
    %515 = vmatprep.subr.bf16.mxu0 0
    %516 = vmatpush1.bf16.msra.mxu0 0
    %517 = vmatprep.subr.bf16.mxu0 0
    %518 = vmatpush1.bf16.msra.mxu0 0
    %519 = vmatprep.subr.bf16.mxu0 0
    %520 = vmatpush1.bf16.msra.mxu0 0
    %521 = vmatprep.subr.bf16.mxu0 0
    %522 = vmatpush1.bf16.msra.mxu0 0
    %523 = vmatprep.mubr.bf16.mxu0 0
    %524 = vmatmul.mubr.bf16.gmra.mrb[0].mxu0 %v486
    %v525 = vpop.f32.mrb[0].mxu0
    %v526 = vadd.f32 0.0, %v525
    %v527 = vpop.f32.mrb[0].mxu0
    %v528 = vpop.f32.mrb[0].mxu0
    %v529 = vpop.f32.mrb[0].mxu0
    %530 = vdwg.mxu0
    %531 = vst.msk [vmem:[#allocation10] sm:$0xff] %vm99, %v388
    %532 = vst.msk [vmem:[#allocation10 + $0x8] sm:$0xff] %vm99, %v434
    %533 = vst.msk [vmem:[#allocation10 + $0x10] sm:$0xff] %vm99, %v480
    %534 = vst.msk [vmem:[#allocation10 + $0x18] sm:$0xff] %vm99, %v526
    // Predicated region
    $region34: #{tpu_custom_call.1} parent=1 // pred_check
      _
    $region35: #{tpu_custom_call.1} parent=1 // pred_check_branch
      %536 = sbr.rel (0) target = $region37
    $region36: #{tpu_custom_call.1} parent=1 // pred_region
      %s538 = ssub.s32 512, 512
      %539 = vsyncadd [#allocation4], %s538
      %s540 = sshll.u32 [#allocation10], 4
      %s541 = int_to_ptr.vmem [resolvable:$true] %s540
      %546 = dma.vmem_to_hbm [thread:$0]  %s541, 512, %s4, [#allocation4], 128, 128, 8
    $region37: #{tpu_custom_call.1} parent=1 // pred_fallthru
      _
    // Predicated region
    $region38: #{tpu_custom_call.1} parent=1 // pred_check
      _
    $region39: #{tpu_custom_call.1} parent=1 // pred_check_branch
      %548 = sbr.rel (0) target = $region41
    $region40: #{tpu_custom_call.1} parent=1 // pred_region
      %s550 = ssub.s32 512, 512
      %551 = vsyncadd [#allocation12], %s550
      %s552 = sshll.u32 [#allocation11], 4
      %s553 = int_to_ptr.vmem [resolvable:$true] %s552
      %558 = dma.vmem_to_hbm [thread:$0]  %s553, 512, %s5, [#allocation12], 128, 128, 8
    $region41: #{tpu_custom_call.1} parent=1 // pred_fallthru
      _
    // Predicated region
    $region42: #{tpu_custom_call.1} parent=1 // pred_check
      _
    $region43: #{tpu_custom_call.1} parent=1 // pred_check_branch
      %560 = sbr.rel (0) target = $region45
    $region44: #{tpu_custom_call.1} parent=1 // pred_region
      %561 = dma.done [#allocation4], 512
    $region45: #{tpu_custom_call.1} parent=1 // pred_fallthru
      _
    // Predicated region
    $region46: #{tpu_custom_call.1} parent=1 // pred_check
      _
    $region47: #{tpu_custom_call.1} parent=1 // pred_check_branch
      %563 = sbr.rel (0) target = $region49
    $region48: #{tpu_custom_call.1} parent=1 // pred_region
      %564 = dma.done [#allocation12], 512
    $region49: #{tpu_custom_call.1} parent=1 // pred_fallthru
      _
    %565 = vsyncpa [#allocation3], 1
    %566 = vsyncpa [#allocation6], 1
    %567 = vsyncpa [#allocation9], 1
    %568 = vsyncpa [#allocation4], 1
    %569 = vsyncpa [#allocation12], 1

</llo_original>
